<compile_context>
chip_gen: v6e
topology: v6e:2x2x1
jax: 0.10.0
libtpu: 0.0.40
codegen_flags: <defaults>
</compile_context>

<pallas_src>
import math

import jax
import jax.numpy as jnp
from jax import lax
from jax.experimental import pallas as pl
from jax.experimental.pallas import tpu as pltpu


def _mha_kernel(q_ref, k_ref, v_ref, wo_ref, bo_ref, out_ref, acc_ref):
    """One grid step == (batch element, query tile, head).

    q_ref:  (1, 1, TQ, D) bf16   query rows for this (batch, tile, head)
            (temperature / sqrt(D) already folded into the Q projection)
    k_ref:  (1, 1, S,  D) bf16   full keys for this (batch, head)
    v_ref:  (1, 1, S,  D) bf16   full values for this (batch, head)
    wo_ref: (1, D, E)    bf16    this head's slice of Wo^T
    bo_ref: (1, E)       f32     output bias (single-buffered, constant)
    out_ref:(1, TQ, E)           output rows (written at the last head)
    acc_ref:(TQ, E)      f32     VMEM accumulator across the head axis
    """
    h = pl.program_id(2)

    @pl.when(h == 0)
    def _init():
        acc_ref[...] = jnp.zeros_like(acc_ref)

    q = q_ref[0, 0]          # (TQ, D) bf16
    k = k_ref[0, 0]          # (S,  D) bf16
    v = v_ref[0, 0]          # (S,  D) bf16

    # (TQ, S) scores on the MXU (bf16 in, f32 out); scale already in Q.
    s = lax.dot_general(q, k, (((1,), (1,)), ((), ())),
                        preferred_element_type=jnp.float32)

    # Softmax over keys, f32 throughout (max-subtracted like F.softmax).
    m = jnp.max(s, axis=-1, keepdims=True)
    p = jnp.exp(s - m)
    l = jnp.sum(p, axis=-1, keepdims=True)

    # Context for this head; probabilities fed to the MXU as bf16.
    ctx = jnp.dot(p.astype(jnp.bfloat16), v,
                  preferred_element_type=jnp.float32)          # (TQ, D)
    ctx = ctx * (1.0 / l)                                      # exact divide

    # Fold this head's context straight into the output projection.
    acc_ref[...] += jnp.dot(ctx.astype(jnp.bfloat16), wo_ref[0],
                            preferred_element_type=jnp.float32)

    @pl.when(h == pl.num_programs(2) - 1)
    def _finalize():
        out_ref[0] = (acc_ref[...] + bo_ref[...]).astype(out_ref.dtype)


def _pick_tq(S: int, E: int) -> int:
    """Largest 128-aligned query tile whose per-step f32 temporaries stay
    comfortably under the v7x 64 MiB VMEM; small sequences use one full tile."""
    if S < 128:
        return S
    for cand in (512, 256, 128):
        foot = cand * S * 4 * 2 + cand * E * 4 * 3   # score/p + acc/out (f32)
        if foot <= 24 * 1024 * 1024:
            return cand
    return 128


def multi_head_attention(q, k, v, params, *, num_heads: int, dropout: float = 0.0):
    """Pallas implementation of MultiHeadAttention.forward (mask=None, eval mode).

    q, k, v: (B, S, E) float32.
    params: dict with wq, bq, wk, bk, wv, bv, wo, bo in torch Linear convention
            (W has shape (out_features, in_features), y = x @ W.T + b).
    `dropout` is forwarded as the attention temperature, exactly like the
    PyTorch module's constructor does (dropout=0.0 => uniform attention).
    """
    B, S, E = q.shape
    assert E % num_heads == 0, "embed_dim needs to be divisible by num_heads"
    H = num_heads
    D = E // H

    # PyTorch quirk: MHA's `dropout` arg becomes the softmax temperature.
    scale = float(dropout) / math.sqrt(D)

    # ---- Wrapper-side prep (one-time XLA work, per the review) -------------
    # Project Q/K/V as one big GEMM each; fold the softmax scale into Q so the
    # (TQ, S) score tensor never needs rescaling inside the kernel.
    Qp = (q @ params["wq"].T + params["bq"]) * scale           # (B, S, E) f32
    Kp = k @ params["wk"].T + params["bk"]
    Vp = v @ params["wv"].T + params["bv"]

    # Head-major layout (B, H, S, D) so per-head blocks are full along the
    # lane dim (no sub-128 lane slices in the kernel); cast to bf16 for MXU.
    def to_heads(t):
        return jnp.transpose(t.reshape(B, S, H, D), (0, 2, 1, 3)).astype(jnp.bfloat16)

    Qh, Kh, Vh = to_heads(Qp), to_heads(Kp), to_heads(Vp)

    # Wo^T reshaped to per-head (D, E) slices; bias stays f32.
    wo_hde = params["wo"].T.reshape(H, D, E).astype(jnp.bfloat16)
    bo_2d = params["bo"].reshape(1, E).astype(jnp.float32)

    # Query tiling: pad ONLY the query length (keys keep their true length,
    # so padding never perturbs the softmax); pad rows are sliced off below.
    TQ = _pick_tq(S, E)
    S_pad = ((S + TQ - 1) // TQ) * TQ
    if S_pad != S:
        Qh = jnp.pad(Qh, ((0, 0), (0, 0), (0, S_pad - S), (0, 0)))
    nq = S_pad // TQ

    # ---- Block specs --------------------------------------------------------
    q_spec = pl.BlockSpec((1, 1, TQ, D), lambda b, qi, h: (b, h, qi, 0))
    kv_spec = pl.BlockSpec((1, 1, S, D), lambda b, qi, h: (b, h, 0, 0))
    wo_spec = pl.BlockSpec((1, D, E), lambda b, qi, h: (h, 0, 0))
    # Constant-index bias: single-buffered (double-buffering buys nothing).
    bo_spec = pl.BlockSpec((1, E), lambda b, qi, h: (0, 0),
                           pipeline_mode=pl.Buffered(1))
    out_spec = pl.BlockSpec((1, TQ, E), lambda b, qi, h: (b, qi, 0))

    # Rough per-step VMEM footprint -> explicit cap (safe on v5e/v6e/v7x).
    est = (2 * (TQ * D + 2 * S * D + D * E) * 2    # double-buffered bf16 inputs
           + 2 * TQ * E * 4                        # double-buffered f32 out block
           + TQ * E * 4                            # f32 accumulator scratch
           + 4 * TQ * S * 4)                       # score / exp temporaries
    vmem_limit = int(min(max(2 * est, 16 * 1024 * 1024), 64 * 1024 * 1024))

    out = pl.pallas_call(
        _mha_kernel,
        out_shape=jax.ShapeDtypeStruct((B, S_pad, E), q.dtype),
        grid_spec=pltpu.PrefetchScalarGridSpec(
            num_scalar_prefetch=0,
            grid=(B, nq, H),
            in_specs=[q_spec, kv_spec, kv_spec, wo_spec, bo_spec],
            out_specs=out_spec,
            scratch_shapes=[pltpu.VMEM((TQ, E), jnp.float32)],
        ),
        compiler_params=pltpu.CompilerParams(
            # batch and query-tile axes are independent output tiles (megacore);
            # the head axis is an output-resident reduction.
            dimension_semantics=("parallel", "parallel", "arbitrary"),
            vmem_limit_bytes=vmem_limit,
        ),
    )(Qh, Kh, Vh, wo_hde, bo_2d)

    if S_pad != S:
        out = out[:, :S, :]
    return out


def _reference(q, k, v, params, *, num_heads, dropout):
    """Pure-JAX f32 reference mirroring the PyTorch forward (eval, mask=None)."""
    B, S, E = q.shape
    D = E // num_heads
    lin = lambda x, w, b: x @ w.T + b
    Q = lin(q, params["wq"], params["bq"])
    K = lin(k, params["wk"], params["bk"])
    V = lin(v, params["wv"], params["bv"])
    split = lambda t: jnp.transpose(t.reshape(B, S, num_heads, D), (0, 2, 1, 3))
    Qh, Kh, Vh = split(Q), split(K), split(V)
    score = jnp.einsum('bhqd,bhkd->bhqk', Qh, Kh) * dropout / math.sqrt(D)
    attn = jax.nn.softmax(score, axis=-1)
    ctx = jnp.einsum('bhqk,bhkd->bhqd', attn, Vh)
    ctx = jnp.transpose(ctx, (0, 2, 1, 3)).reshape(B, S, E)
    return lin(ctx, params["wo"], params["bo"])


def init_params(key, embed_dim):
    ks = jax.random.split(key, 8)
    # wq: normal(0, 0.01) as in the module; others: small uniform (deterministic).
    bound = 1.0 / math.sqrt(embed_dim)
    u = lambda k, shape: jax.random.uniform(k, shape, jnp.float32, -bound, bound)
    return {
        "wq": 0.01 * jax.random.normal(ks[0], (embed_dim, embed_dim), jnp.float32),
        "bq": u(ks[1], (embed_dim,)),
        "wk": u(ks[2], (embed_dim, embed_dim)),
        "bk": u(ks[3], (embed_dim,)),
        "wv": u(ks[4], (embed_dim, embed_dim)),
        "bv": u(ks[5], (embed_dim,)),
        "wo": u(ks[6], (embed_dim, embed_dim)),
        "bo": u(ks[7], (embed_dim,)),
    }


if __name__ == "__main__":
    B, S, E, H = 2, 8, 32, 4
    key = jax.random.PRNGKey(0)
    kq, kk, kv, kp = jax.random.split(key, 4)
    q = jax.random.normal(kq, (B, S, E), jnp.float32)
    k = jax.random.normal(kk, (B, S, E), jnp.float32)
    v = jax.random.normal(kv, (B, S, E), jnp.float32)
    params = init_params(kp, E)

    # `dropout` is forwarded as the attention temperature (PyTorch quirk);
    # use 1.0 so the attention is the standard scaled dot-product.
    dropout = 1.0

    out = multi_head_attention(q, k, v, params, num_heads=H, dropout=dropout)
    out = jax.block_until_ready(out)

    ref = _reference(q, k, v, params, num_heads=H, dropout=dropout)
    assert out.shape == (B, S, E)
    # Tolerance reflects bf16 MXU inputs (f32 accumulation, f32 softmax,
    # exact reciprocal); at these magnitudes the error is well below 3e-2.
    err = float(jnp.max(jnp.abs(out - ref)))
    assert jnp.allclose(out, ref, atol=3e-2, rtol=3e-2), err

    print("KERNEL_OK")
</pallas_src>

<mosaic_0001>
module attributes {stable_mosaic.version = 11 : i64} {
  func.func @_mha_kernel(%arg0: i32, %arg1: i32, %arg2: i32, %arg3: memref<1x1x8x8xbf16, #tpu.memory_space<vmem>>, %arg4: memref<1x1x8x8xbf16, #tpu.memory_space<vmem>>, %arg5: memref<1x1x8x8xbf16, #tpu.memory_space<vmem>>, %arg6: memref<1x8x32xbf16, #tpu.memory_space<vmem>>, %arg7: memref<1x32xf32, #tpu.memory_space<vmem>>, %arg8: memref<1x8x32xf32, #tpu.memory_space<vmem>>, %arg9: memref<8x32xf32, #tpu.memory_space<vmem>>) attributes {dimension_semantics = [#tpu.dimension_semantics<parallel>, #tpu.dimension_semantics<parallel>, #tpu.dimension_semantics<arbitrary>], iteration_bounds = array<i64: 2, 1, 4>, scalar_prefetch = 0 : i64, scratch_operands = 1 : i64, tpu.core_type = #tpu.core_type<tc>, window_params = [{transform_indices = @transform_0, window_bounds = array<i64: 1, 1, 8, 8>}, {transform_indices = @transform_1, window_bounds = array<i64: 1, 1, 8, 8>}, {transform_indices = @transform_2, window_bounds = array<i64: 1, 1, 8, 8>}, {transform_indices = @transform_3, window_bounds = array<i64: 1, 8, 32>}, {pipeline_mode = #tpu.pipeline_mode<synchronous>, transform_indices = @transform_4, window_bounds = array<i64: 1, 32>}, {transform_indices = @transform_5, window_bounds = array<i64: 1, 8, 32>}]} {
    %c0_i32 = arith.constant 0 : i32
    %0 = arith.cmpi eq, %arg2, %c0_i32 : i32
    %1 = arith.extui %0 : i1 to i32
    %c0_i32_0 = arith.constant 0 : i32
    %2 = arith.cmpi ne, %1, %c0_i32_0 : i32
    scf.if %2 {
      %cst_25 = arith.constant 0.000000e+00 : f32
      %33 = vector.broadcast %cst_25 : f32 to vector<8x32xf32>
      %c0_26 = arith.constant 0 : index
      %c0_27 = arith.constant 0 : index
      %34 = vector.load %arg9[%c0_26, %c0_27] : memref<8x32xf32, #tpu.memory_space<vmem>>, vector<8x32xf32>
      tpu.vector_store %arg9[%c0_26, %c0_27], %33 {strides = array<i32>} : memref<8x32xf32, #tpu.memory_space<vmem>>, vector<8x32xf32>,
    } else {
    }
    %c0 = arith.constant 0 : index
    %c0_1 = arith.constant 0 : index
    %c0_2 = arith.constant 0 : index
    %c0_3 = arith.constant 0 : index
    %3 = vector.load %arg3[%c0, %c0_1, %c0_2, %c0_3] : memref<1x1x8x8xbf16, #tpu.memory_space<vmem>>, vector<1x1x8x8xbf16>
    %4 = vector.shape_cast %3 : vector<1x1x8x8xbf16> to vector<8x8xbf16>
    %c0_4 = arith.constant 0 : index
    %c0_5 = arith.constant 0 : index
    %c0_6 = arith.constant 0 : index
    %c0_7 = arith.constant 0 : index
    %5 = vector.load %arg4[%c0_4, %c0_5, %c0_6, %c0_7] : memref<1x1x8x8xbf16, #tpu.memory_space<vmem>>, vector<1x1x8x8xbf16>
    %6 = vector.shape_cast %5 : vector<1x1x8x8xbf16> to vector<8x8xbf16>
    %c0_8 = arith.constant 0 : index
    %c0_9 = arith.constant 0 : index
    %c0_10 = arith.constant 0 : index
    %c0_11 = arith.constant 0 : index
    %7 = vector.load %arg5[%c0_8, %c0_9, %c0_10, %c0_11] : memref<1x1x8x8xbf16, #tpu.memory_space<vmem>>, vector<1x1x8x8xbf16>
    %8 = vector.shape_cast %7 : vector<1x1x8x8xbf16> to vector<8x8xbf16>
    %cst = arith.constant dense<0.000000e+00> : vector<8x8xf32>
    %9 = tpu.matmul %4, %6, %cst {dimension_numbers = #tpu.dot_dimension_numbers<[1], [1], [0], [0], [0, 0, 1, 0], [], []>} : vector<8x8xbf16>, vector<8x8xbf16>, vector<8x8xf32> -> vector<8x8xf32>
    %cst_12 = arith.constant dense<0xFF800000> : vector<8xf32>
    %10 = vector.multi_reduction <maximumf>, %9, %cst_12 [1] : vector<8x8xf32> to vector<8xf32>
    %11 = vector.shape_cast %10 : vector<8xf32> to vector<8x1xf32>
    %12 = vector.broadcast %11 : vector<8x1xf32> to vector<8x8xf32>
    %13 = arith.subf %9, %12 : vector<8x8xf32>
    %14 = math.exp %13 : vector<8x8xf32>
    %cst_13 = arith.constant dense<0.000000e+00> : vector<8xf32>
    %15 = vector.multi_reduction <add>, %14, %cst_13 [1] : vector<8x8xf32> to vector<8xf32>
    %16 = vector.shape_cast %15 : vector<8xf32> to vector<8x1xf32>
    %17 = arith.truncf %14 : vector<8x8xf32> to vector<8x8xbf16>
    %cst_14 = arith.constant dense<0.000000e+00> : vector<8x8xf32>
    %18 = tpu.matmul %17, %8, %cst_14 {dimension_numbers = #tpu.dot_dimension_numbers<[1], [0], [0], [1], [0, 0, 1, 1], [], []>} : vector<8x8xbf16>, vector<8x8xbf16>, vector<8x8xf32> -> vector<8x8xf32>
    %cst_15 = arith.constant 1.000000e+00 : f32
    %19 = vector.broadcast %cst_15 : f32 to vector<8x1xf32>
    %20 = arith.divf %19, %16 : vector<8x1xf32>
    %21 = vector.broadcast %20 : vector<8x1xf32> to vector<8x8xf32>
    %22 = arith.mulf %18, %21 : vector<8x8xf32>
    %c0_16 = arith.constant 0 : index
    %c0_17 = arith.constant 0 : index
    %23 = vector.load %arg9[%c0_16, %c0_17] : memref<8x32xf32, #tpu.memory_space<vmem>>, vector<8x32xf32>
    %24 = arith.truncf %22 : vector<8x8xf32> to vector<8x8xbf16>
    %c0_18 = arith.constant 0 : index
    %c0_19 = arith.constant 0 : index
    %c0_20 = arith.constant 0 : index
    %25 = vector.load %arg6[%c0_18, %c0_19, %c0_20] : memref<1x8x32xbf16, #tpu.memory_space<vmem>>, vector<1x8x32xbf16>
    %26 = vector.shape_cast %25 : vector<1x8x32xbf16> to vector<8x32xbf16>
    %cst_21 = arith.constant dense<0.000000e+00> : vector<8x32xf32>
    %27 = tpu.matmul %24, %26, %cst_21 {dimension_numbers = #tpu.dot_dimension_numbers<[1], [0], [0], [1], [0, 0, 1, 1], [], []>} : vector<8x8xbf16>, vector<8x32xbf16>, vector<8x32xf32> -> vector<8x32xf32>
    %28 = arith.addf %23, %27 : vector<8x32xf32>
    %c0_22 = arith.constant 0 : index
    %c0_23 = arith.constant 0 : index
    %29 = vector.load %arg9[%c0_22, %c0_23] : memref<8x32xf32, #tpu.memory_space<vmem>>, vector<8x32xf32>
    tpu.vector_store %arg9[%c0_22, %c0_23], %28 {strides = array<i32>} : memref<8x32xf32, #tpu.memory_space<vmem>>, vector<8x32xf32>,
    %c3_i32 = arith.constant 3 : i32
    %30 = arith.cmpi eq, %arg2, %c3_i32 : i32
    %31 = arith.extui %30 : i1 to i32
    %c0_i32_24 = arith.constant 0 : i32
    %32 = arith.cmpi ne, %31, %c0_i32_24 : i32
    scf.if %32 {
      %c0_25 = arith.constant 0 : index
      %c0_26 = arith.constant 0 : index
      %33 = vector.load %arg9[%c0_25, %c0_26] : memref<8x32xf32, #tpu.memory_space<vmem>>, vector<8x32xf32>
      %c0_27 = arith.constant 0 : index
      %c0_28 = arith.constant 0 : index
      %34 = vector.load %arg7[%c0_27, %c0_28] : memref<1x32xf32, #tpu.memory_space<vmem>>, vector<1x32xf32>
      %35 = vector.broadcast %34 : vector<1x32xf32> to vector<8x32xf32>
      %36 = arith.addf %33, %35 : vector<8x32xf32>
      %c0_29 = arith.constant 0 : index
      %c0_30 = arith.constant 0 : index
      %c0_31 = arith.constant 0 : index
      %37 = vector.load %arg8[%c0_29, %c0_30, %c0_31] : memref<1x8x32xf32, #tpu.memory_space<vmem>>, vector<1x8x32xf32>
      %38 = vector.shape_cast %37 : vector<1x8x32xf32> to vector<8x32xf32>
      %39 = vector.shape_cast %36 : vector<8x32xf32> to vector<1x8x32xf32>
      tpu.vector_store %arg8[%c0_29, %c0_30, %c0_31], %39 {strides = array<i32>} : memref<1x8x32xf32, #tpu.memory_space<vmem>>, vector<1x8x32xf32>,
    } else {
    }
    return
  }
  func.func @transform_0(%arg0: i32, %arg1: i32, %arg2: i32) -> (i32, i32, i32, i32) {
    %c0_i32 = arith.constant 0 : i32
    %c0_i32_0 = arith.constant 0 : i32
    return %arg0, %arg2, %arg1, %c0_i32 : i32, i32, i32, i32
  }
  func.func @transform_1(%arg0: i32, %arg1: i32, %arg2: i32) -> (i32, i32, i32, i32) {
    %c0_i32 = arith.constant 0 : i32
    %c0_i32_0 = arith.constant 0 : i32
    %c0_i32_1 = arith.constant 0 : i32
    return %arg0, %arg2, %c0_i32, %c0_i32_0 : i32, i32, i32, i32
  }
  func.func @transform_2(%arg0: i32, %arg1: i32, %arg2: i32) -> (i32, i32, i32, i32) {
    %c0_i32 = arith.constant 0 : i32
    %c0_i32_0 = arith.constant 0 : i32
    %c0_i32_1 = arith.constant 0 : i32
    return %arg0, %arg2, %c0_i32, %c0_i32_0 : i32, i32, i32, i32
  }
  func.func @transform_3(%arg0: i32, %arg1: i32, %arg2: i32) -> (i32, i32, i32) {
    %c0_i32 = arith.constant 0 : i32
    %c0_i32_0 = arith.constant 0 : i32
    %c0_i32_1 = arith.constant 0 : i32
    return %arg2, %c0_i32, %c0_i32_0 : i32, i32, i32
  }
  func.func @transform_4(%arg0: i32, %arg1: i32, %arg2: i32) -> (i32, i32) {
    %c0_i32 = arith.constant 0 : i32
    %c0_i32_0 = arith.constant 0 : i32
    %c0_i32_1 = arith.constant 0 : i32
    return %c0_i32, %c0_i32_0 : i32, i32
  }
  func.func @transform_5(%arg0: i32, %arg1: i32, %arg2: i32) -> (i32, i32, i32) {
    %c0_i32 = arith.constant 0 : i32
    %c0_i32_0 = arith.constant 0 : i32
    return %arg0, %arg1, %c0_i32 : i32, i32, i32
  }
}

</mosaic_0001>

<llo_original>
// kernel: tpu_custom_call.1
$region0: #{tpu_custom_call.1}
  #allocation0 [shape = 'u32[]', space=smem, size = 0x4, offset = 0x4, fixed_abs, tag = 'smem constant byte address 0x4 - core index']
  #allocation1 [shape = 'u32[144,128]{1,0:T(1,128)}', space=vmem, size = 0x12000, scoped, tag = 'internal scratch']
  #allocation2 [shape = 'f32[8,32]{1,0:T(8,128)}', space=vmem, size = 0x1000, scoped, tag = 'scratch operand']
  %s0 = inlined_call_operand.hbm [shape: bf16[2,4,8,8], index: 0, kind: input, shape index: {}]
  %s1 = inlined_call_operand.hbm [shape: bf16[2,4,8,8], index: 1, kind: input, shape index: {}]
  %s2 = inlined_call_operand.hbm [shape: bf16[2,4,8,8], index: 2, kind: input, shape index: {}]
  %s3 = inlined_call_operand.hbm [shape: bf16[4,8,32], index: 3, kind: input, shape index: {}]
  %s4 = inlined_call_operand.vmem [shape: f32[1,32], index: 4, kind: input, shape index: {}]
  %s5 = inlined_call_operand.hbm [shape: f32[2,8,32], index: 5, kind: output, shape index: {}]
  %s6 = sld [smem:[#allocation0]]
  $region77: #{tpu_custom_call.1} parent=0
    _
  %s8 = ssub.s32 1, %s6
  %s9 = scalar_select 0, %s8, %s6
  $region1: #{tpu_custom_call.1} parent=0
    #allocation3 [shape = 'u8[4096]{0}', space=vmem, size = 0x1000, scoped, tag = 'input window, operand 0']
    #allocation4 [shape = 's32[2]{0}', space=sflag, size = 0x8, scoped, tag = 'scoped memory for tpu_custom_call.1']
    #allocation5 [shape = 's32[2]{0}', space=sflag, size = 0x8, scoped, tag = 'scoped memory for tpu_custom_call.1']
    #allocation6 [shape = 'u8[4096]{0}', space=vmem, size = 0x1000, scoped, tag = 'input window, operand 1']
    #allocation7 [shape = 's32[2]{0}', space=sflag, size = 0x8, scoped, tag = 'scoped memory for tpu_custom_call.1']
    #allocation8 [shape = 'u8[4096]{0}', space=vmem, size = 0x1000, scoped, tag = 'input window, operand 2']
    #allocation9 [shape = 'u8[4096]{0}', space=vmem, size = 0x1000, scoped, tag = 'input window, operand 3']
    #allocation10 [shape = 's32[2]{0}', space=sflag, size = 0x8, scoped, tag = 'scoped memory for tpu_custom_call.1']
    #allocation11 [shape = 'u8[8192]{0}', space=vmem, size = 0x2000, scoped, tag = 'output window, operand 0']
    %10 = vsyncpa [#allocation4], 0
    %s11 = scalar_lea.sflag [#allocation4], 1
    %12 = vsyncpa %s11, 0
    %13 = vsyncpa [#allocation7], 0
    %s14 = scalar_lea.sflag [#allocation7], 1
    %15 = vsyncpa %s14, 0
    %16 = vsyncpa [#allocation10], 0
    %s17 = scalar_lea.sflag [#allocation10], 1
    %18 = vsyncpa %s17, 0
    %19 = vsyncpa [#allocation5], 0
    %s20 = scalar_lea.sflag [#allocation5], 1
    %21 = vsyncpa %s20, 0
    loop: start=0, step=1, limit=10
    $region2: #{tpu_custom_call.1} parent=1 // loop_pre_header
      _
    $region3: #{tpu_custom_call.1} parent=1 // loop_header
      %s23 = sphi 0, %s27
      %p24 = scmp.ge.s32.totalorder %s23, 10
      %s30 = sphi 0, %s49
      %s31 = sphi 0, %s45
      %s32 = sphi 0, %s41
      %s33 = sphi 0, %s30
      %s34 = sphi 0, %s31
      %s35 = sphi 0, %s32
      %s36 = sphi 0, %s33
      %s37 = sphi 0, %s34
      %s38 = sphi 0, %s35
      %s56 = sphi 0, %s58
      %s59 = sphi 0, %s56
      %s60 = sphi 0, %s59
      %s76 = sphi 0, %s60
      %s84 = sphi 0, %s86
      %s87 = sphi 0, %s84
      %s88 = sphi 0, %s87
      %s104 = sphi 0, %s88
      %s112 = sphi 0, %s114
      %s115 = sphi 0, %s112
      %s116 = sphi 0, %s115
      %s132 = sphi 0, %s116
      %s138 = sphi 0, %s140
      %s141 = sphi 0, %s138
      %s142 = sphi 0, %s141
      %s158 = sphi 0, %s142
      %s162 = sphi 0, %s162
      %s164 = sphi 0, %s162
      %s165 = sphi 0, %s164
      %s179 = sphi 0, %s165
      %s187 = sphi 0, %s189
      %s190 = sphi 0, %s187
      %s191 = sphi 0, %s190
      %s207 = sphi 0, %s191
    $region4: #{tpu_custom_call.1} parent=1 // loop_header_branch
      %26 = sbr.rel (%p24) target = $region8
    $region5: #{tpu_custom_call.1} parent=1 // loop_body
      %s28 = ssub.s32 %s23, 1
      %s29 = ssub.s32 %s23, 2
      %s39 = sadd.s32 1, %s32
      %p40 = scmp.ge.s32.totalorder %s39, 4
      %s41 = scalar_select %p40, 0, %s39
      %s42 = sadd.s32 1, %s31
      %s43 = scalar_select %p40, %s42, %s31
      %p44 = scmp.ge.s32.totalorder %s43, 1
      %s45 = scalar_select %p44, 0, %s43
      %s46 = sadd.s32 1, %s30
      %s47 = scalar_select %p44, %s46, %s30
      %p48 = scmp.ge.s32.totalorder %s47, 2
      %s49 = scalar_select %p48, 0, %s47
      %s50 = ssub.s32 %s30, %s49
      %s51 = ssub.s32 %s32, %s41
      %s52 = sor.u32 %s50, %s51
      %s53 = ssub.s32 %s31, %s45
      %s54 = sor.u32 %s52, %s53
      %p55 = scmp.eq.s32.totalorder %s54, 0
      %s57 = sadd.s32 %s56, 1
      %s58 = scalar_select %p55, %s56, %s57
      %p61 = pneg %p55
      %p62 = scmp.eq.s32.totalorder %s23, 7
      %p63 = por %p61, %p62
      %p64 = scmp.ne.s32.totalorder %s56, %s59
      %p65 = scmp.eq.s32.totalorder %s23, 0
      %p66 = por %p64, %p65
      %p67 = scmp.ne.s32.totalorder %s56, %s59
      %p68 = scmp.eq.s32.totalorder %s28, 7
      %p69 = por %p67, %p68
      %p70 = scmp.ne.s32.totalorder %s59, %s60
      %p71 = scmp.eq.s32.totalorder %s28, 0
      %p72 = por %p70, %p71
      %p73 = scmp.ne.s32.totalorder %s59, %s60
      %p74 = scmp.eq.s32.totalorder %s29, 7
      %p75 = por %p73, %p74
      %p77 = scmp.ne.s32.totalorder %s60, %s76
      %p78 = scmp.eq.s32.totalorder %s29, 0
      %p79 = por %p77, %p78
      %s80 = ssub.s32 %s30, %s49
      %s81 = ssub.s32 %s32, %s41
      %s82 = sor.u32 %s80, %s81
      %p83 = scmp.eq.s32.totalorder %s82, 0
      %s85 = sadd.s32 %s84, 1
      %s86 = scalar_select %p83, %s84, %s85
      %p89 = pneg %p83
      %p90 = scmp.eq.s32.totalorder %s23, 7
      %p91 = por %p89, %p90
      %p92 = scmp.ne.s32.totalorder %s84, %s87
      %p93 = scmp.eq.s32.totalorder %s23, 0
      %p94 = por %p92, %p93
      %p95 = scmp.ne.s32.totalorder %s84, %s87
      %p96 = scmp.eq.s32.totalorder %s28, 7
      %p97 = por %p95, %p96
      %p98 = scmp.ne.s32.totalorder %s87, %s88
      %p99 = scmp.eq.s32.totalorder %s28, 0
      %p100 = por %p98, %p99
      %p101 = scmp.ne.s32.totalorder %s87, %s88
      %p102 = scmp.eq.s32.totalorder %s29, 7
      %p103 = por %p101, %p102
      %p105 = scmp.ne.s32.totalorder %s88, %s104
      %p106 = scmp.eq.s32.totalorder %s29, 0
      %p107 = por %p105, %p106
      %s108 = ssub.s32 %s30, %s49
      %s109 = ssub.s32 %s32, %s41
      %s110 = sor.u32 %s108, %s109
      %p111 = scmp.eq.s32.totalorder %s110, 0
      %s113 = sadd.s32 %s112, 1
      %s114 = scalar_select %p111, %s112, %s113
      %p117 = pneg %p111
      %p118 = scmp.eq.s32.totalorder %s23, 7
      %p119 = por %p117, %p118
      %p120 = scmp.ne.s32.totalorder %s112, %s115
      %p121 = scmp.eq.s32.totalorder %s23, 0
      %p122 = por %p120, %p121
      %p123 = scmp.ne.s32.totalorder %s112, %s115
      %p124 = scmp.eq.s32.totalorder %s28, 7
      %p125 = por %p123, %p124
      %p126 = scmp.ne.s32.totalorder %s115, %s116
      %p127 = scmp.eq.s32.totalorder %s28, 0
      %p128 = por %p126, %p127
      %p129 = scmp.ne.s32.totalorder %s115, %s116
      %p130 = scmp.eq.s32.totalorder %s29, 7
      %p131 = por %p129, %p130
      %p133 = scmp.ne.s32.totalorder %s116, %s132
      %p134 = scmp.eq.s32.totalorder %s29, 0
      %p135 = por %p133, %p134
      %s136 = ssub.s32 %s32, %s41
      %p137 = scmp.eq.s32.totalorder %s136, 0
      %s139 = sadd.s32 %s138, 1
      %s140 = scalar_select %p137, %s138, %s139
      %p143 = pneg %p137
      %p144 = scmp.eq.s32.totalorder %s23, 7
      %p145 = por %p143, %p144
      %p146 = scmp.ne.s32.totalorder %s138, %s141
      %p147 = scmp.eq.s32.totalorder %s23, 0
      %p148 = por %p146, %p147
      %p149 = scmp.ne.s32.totalorder %s138, %s141
      %p150 = scmp.eq.s32.totalorder %s28, 7
      %p151 = por %p149, %p150
      %p152 = scmp.ne.s32.totalorder %s141, %s142
      %p153 = scmp.eq.s32.totalorder %s28, 0
      %p154 = por %p152, %p153
      %p155 = scmp.ne.s32.totalorder %s141, %s142
      %p156 = scmp.eq.s32.totalorder %s29, 7
      %p157 = por %p155, %p156
      %p159 = scmp.ne.s32.totalorder %s142, %s158
      %p160 = scmp.eq.s32.totalorder %s29, 0
      %p161 = por %p159, %p160
      %s163 = sadd.s32 %s162, 1
      %p166 = scmp.eq.s32.totalorder %s23, 7
      %p167 = scmp.ne.s32.totalorder %s162, %s164
      %p168 = scmp.eq.s32.totalorder %s23, 0
      %p169 = por %p167, %p168
      %p170 = scmp.ne.s32.totalorder %s162, %s164
      %p171 = scmp.eq.s32.totalorder %s28, 7
      %p172 = por %p170, %p171
      %p173 = scmp.ne.s32.totalorder %s164, %s165
      %p174 = scmp.eq.s32.totalorder %s28, 0
      %p175 = por %p173, %p174
      %p176 = scmp.ne.s32.totalorder %s164, %s165
      %p177 = scmp.eq.s32.totalorder %s29, 7
      %p178 = por %p176, %p177
      %p180 = scmp.ne.s32.totalorder %s165, %s179
      %p181 = scmp.eq.s32.totalorder %s29, 0
      %p182 = por %p180, %p181
      %s183 = ssub.s32 %s30, %s49
      %s184 = ssub.s32 %s31, %s45
      %s185 = sor.u32 %s183, %s184
      %p186 = scmp.eq.s32.totalorder %s185, 0
      %s188 = sadd.s32 %s187, 1
      %s189 = scalar_select %p186, %s187, %s188
      %p192 = pneg %p186
      %p193 = scmp.eq.s32.totalorder %s23, 7
      %p194 = por %p192, %p193
      %p195 = scmp.ne.s32.totalorder %s187, %s190
      %p196 = scmp.eq.s32.totalorder %s23, 0
      %p197 = por %p195, %p196
      %p198 = scmp.ne.s32.totalorder %s187, %s190
      %p199 = scmp.eq.s32.totalorder %s28, 7
      %p200 = por %p198, %p199
      %p201 = scmp.ne.s32.totalorder %s190, %s191
      %p202 = scmp.eq.s32.totalorder %s28, 0
      %p203 = por %p201, %p202
      %p204 = scmp.ne.s32.totalorder %s190, %s191
      %p205 = scmp.eq.s32.totalorder %s29, 7
      %p206 = por %p204, %p205
      %p208 = scmp.ne.s32.totalorder %s191, %s207
      %p209 = scmp.eq.s32.totalorder %s29, 0
      %p210 = por %p208, %p209
      %p211 = scmp.le.s32.totalorder 1, %s23
      %p212 = scmp.lt.s32.totalorder %s23, 9
      %p213 = pnand %p211, %p212
      %p214 = pneg %p213
      // Predicated region
      $region9: #{tpu_custom_call.1} parent=5 // pred_check
        _
      $region10: #{tpu_custom_call.1} parent=5 // pred_check_branch
        %216 = sbr.rel (%p213) target = $region12
      $region11: #{tpu_custom_call.1} parent=5 // pred_region
        %s217 = ssub.s32 %s23, 1
        // Predicated region
        $region13: #{tpu_custom_call.1} parent=11 // pred_check
          %p218 = pneg %p175
        $region14: #{tpu_custom_call.1} parent=11 // pred_check_branch
          %220 = sbr.rel (%p218) target = $region16
        $region15: #{tpu_custom_call.1} parent=11 // pred_region
          _
        $region16: #{tpu_custom_call.1} parent=11 // pred_fallthru
          _
      $region12: #{tpu_custom_call.1} parent=5 // pred_fallthru
        _
      %p221 = scmp.lt.s32.totalorder %s23, 8
      // Predicated region
      $region17: #{tpu_custom_call.1} parent=5 // pred_check
        %p222 = pneg %p221
      $region18: #{tpu_custom_call.1} parent=5 // pred_check_branch
        %224 = sbr.rel (%p222) target = $region20
      $region19: #{tpu_custom_call.1} parent=5 // pred_region
        // Predicated region
        $region21: #{tpu_custom_call.1} parent=19 // pred_check
          %p225 = pneg %p66
        $region22: #{tpu_custom_call.1} parent=19 // pred_check_branch
          %227 = sbr.rel (%p225) target = $region24
        $region23: #{tpu_custom_call.1} parent=19 // pred_region
          %s228 = sand.u32 %s56, 1
          %s229 = scalar_lea.sflag [#allocation4], %s228
          %s230 = sand.u32 %s56, 1
          %s231 = smul.addr %s230, 4
          %s232 = scalar_lea.vmem [#allocation3], %s231
          %s234 = ssub.s32 64, 64
          %235 = vsyncadd %s229, %s234
          %s236 = sadd.s32 %s31, %s32
          %s237 = smul.addr %s30, 4
          %s238 = sadd.s32 %s236, %s237
          %s239 = smul.addr %s238, 64
          %s240 = scalar_lea.hbm %s0, %s239
          %s242 = sshll.u32 %s232, 4
          %s243 = int_to_ptr.vmem [resolvable:$true] %s242
          %245 = dma.hbm_to_vmem [thread:$0]  %s240, 64, %s243, %s229
        $region24: #{tpu_custom_call.1} parent=19 // pred_fallthru
          _
        // Predicated region
        $region25: #{tpu_custom_call.1} parent=19 // pred_check
          %p246 = pneg %p94
        $region26: #{tpu_custom_call.1} parent=19 // pred_check_branch
          %248 = sbr.rel (%p246) target = $region28
        $region27: #{tpu_custom_call.1} parent=19 // pred_region
          %s249 = sand.u32 %s23, 1
          %s250 = scalar_lea.sflag [#allocation7], %s249
          %s251 = sand.u32 %s84, 1
          %s252 = smul.addr %s251, 4
          %s253 = scalar_lea.vmem [#allocation6], %s252
          %s255 = ssub.s32 64, 64
          %256 = vsyncadd %s250, %s255
          %s257 = smul.addr %s30, 4
          %s258 = sadd.s32 %s32, %s257
          %s259 = smul.addr %s258, 64
          %s260 = scalar_lea.hbm %s1, %s259
          %s262 = sshll.u32 %s253, 4
          %s263 = int_to_ptr.vmem [resolvable:$true] %s262
          %265 = dma.hbm_to_vmem [thread:$0]  %s260, 64, %s263, %s250
        $region28: #{tpu_custom_call.1} parent=19 // pred_fallthru
          _
        // Predicated region
        $region29: #{tpu_custom_call.1} parent=19 // pred_check
          %p266 = pneg %p122
        $region30: #{tpu_custom_call.1} parent=19 // pred_check_branch
          %268 = sbr.rel (%p266) target = $region32
        $region31: #{tpu_custom_call.1} parent=19 // pred_region
          %s269 = sand.u32 %s23, 1
          %s270 = scalar_lea.sflag [#allocation7], %s269
          %s271 = sand.u32 %s112, 1
          %s272 = smul.addr %s271, 4
          %s273 = scalar_lea.vmem [#allocation8], %s272
          %s275 = ssub.s32 64, 64
          %276 = vsyncadd %s270, %s275
          %s277 = smul.addr %s30, 4
          %s278 = sadd.s32 %s32, %s277
          %s279 = smul.addr %s278, 64
          %s280 = scalar_lea.hbm %s2, %s279
          %s282 = sshll.u32 %s273, 4
          %s283 = int_to_ptr.vmem [resolvable:$true] %s282
          %285 = dma.hbm_to_vmem [thread:$0]  %s280, 64, %s283, %s270
        $region32: #{tpu_custom_call.1} parent=19 // pred_fallthru
          _
        // Predicated region
        $region33: #{tpu_custom_call.1} parent=19 // pred_check
          %p286 = pneg %p148
        $region34: #{tpu_custom_call.1} parent=19 // pred_check_branch
          %288 = sbr.rel (%p286) target = $region36
        $region35: #{tpu_custom_call.1} parent=19 // pred_region
          %s289 = sand.u32 %s138, 1
          %s290 = scalar_lea.sflag [#allocation10], %s289
          %s291 = sand.u32 %s138, 1
          %s292 = smul.addr %s291, 4
          %s293 = scalar_lea.vmem [#allocation9], %s292
          %s295 = ssub.s32 64, 64
          %296 = vsyncadd %s290, %s295
          %s297 = smul.addr %s32, 64
          %s298 = scalar_lea.hbm %s3, %s297
          %s300 = sshll.u32 %s293, 4
          %s301 = int_to_ptr.vmem [resolvable:$true] %s300
          %303 = dma.hbm_to_vmem [thread:$0]  %s298, 64, %s301, %s290
        $region36: #{tpu_custom_call.1} parent=19 // pred_fallthru
          _
      $region20: #{tpu_custom_call.1} parent=5 // pred_fallthru
        _
      %p304 = scmp.le.s32.totalorder 1, %s23
      %p305 = scmp.lt.s32.totalorder %s23, 9
      %p306 = pnand %p304, %p305
      %p307 = pneg %p306
      // Predicated region
      $region37: #{tpu_custom_call.1} parent=5 // pred_check
        _
      $region38: #{tpu_custom_call.1} parent=5 // pred_check_branch
        %309 = sbr.rel (%p306) target = $region40
      $region39: #{tpu_custom_call.1} parent=5 // pred_region
        %s310 = ssub.s32 %s23, 1
        %s311 = sand.u32 %s59, 1
        %s312 = scalar_lea.sflag [#allocation4], %s311
        %s313 = sand.u32 %s59, 1
        %s314 = smul.addr %s313, 4
        %s315 = scalar_lea.vmem [#allocation3], %s314
        // Predicated region
        $region41: #{tpu_custom_call.1} parent=39 // pred_check
          %p316 = pneg %p72
        $region42: #{tpu_custom_call.1} parent=39 // pred_check_branch
          %318 = sbr.rel (%p316) target = $region44
        $region43: #{tpu_custom_call.1} parent=39 // pred_region
          %319 = dma.done %s312, 64
        $region44: #{tpu_custom_call.1} parent=39 // pred_fallthru
          _
        %s320 = sand.u32 %s28, 1
        %s321 = scalar_lea.sflag [#allocation7], %s320
        %s322 = sand.u32 %s87, 1
        %s323 = smul.addr %s322, 4
        %s324 = scalar_lea.vmem [#allocation6], %s323
        // Predicated region
        $region45: #{tpu_custom_call.1} parent=39 // pred_check
          %p325 = pneg %p100
        $region46: #{tpu_custom_call.1} parent=39 // pred_check_branch
          %327 = sbr.rel (%p325) target = $region48
        $region47: #{tpu_custom_call.1} parent=39 // pred_region
          %328 = dma.done %s321, 64
        $region48: #{tpu_custom_call.1} parent=39 // pred_fallthru
          _
        %s329 = sand.u32 %s28, 1
        %s330 = scalar_lea.sflag [#allocation7], %s329
        %s331 = sand.u32 %s115, 1
        %s332 = smul.addr %s331, 4
        %s333 = scalar_lea.vmem [#allocation8], %s332
        // Predicated region
        $region49: #{tpu_custom_call.1} parent=39 // pred_check
          %p334 = pneg %p128
        $region50: #{tpu_custom_call.1} parent=39 // pred_check_branch
          %336 = sbr.rel (%p334) target = $region52
        $region51: #{tpu_custom_call.1} parent=39 // pred_region
          %337 = dma.done %s330, 64
        $region52: #{tpu_custom_call.1} parent=39 // pred_fallthru
          _
        %s338 = sand.u32 %s141, 1
        %s339 = scalar_lea.sflag [#allocation10], %s338
        %s340 = sand.u32 %s141, 1
        %s341 = smul.addr %s340, 4
        %s342 = scalar_lea.vmem [#allocation9], %s341
        // Predicated region
        $region53: #{tpu_custom_call.1} parent=39 // pred_check
          %p343 = pneg %p154
        $region54: #{tpu_custom_call.1} parent=39 // pred_check_branch
          %345 = sbr.rel (%p343) target = $region56
        $region55: #{tpu_custom_call.1} parent=39 // pred_region
          %346 = dma.done %s339, 64
        $region56: #{tpu_custom_call.1} parent=39 // pred_fallthru
          _
        %s347 = sand.u32 %s59, 1
        %s348 = scalar_lea.sflag [#allocation4], %s347
        %s349 = sand.u32 %s59, 1
        %s350 = smul.addr %s349, 4
        %s351 = scalar_lea.vmem [#allocation3], %s350
        %p352 = pneg %p72
        %p353 = pneg %p69
        %s354 = sand.u32 %s28, 1
        %s355 = scalar_lea.sflag [#allocation7], %s354
        %s356 = sand.u32 %s87, 1
        %s357 = smul.addr %s356, 4
        %s358 = scalar_lea.vmem [#allocation6], %s357
        %p359 = pneg %p100
        %p360 = pneg %p97
        %s361 = sand.u32 %s28, 1
        %s362 = scalar_lea.sflag [#allocation7], %s361
        %s363 = sand.u32 %s115, 1
        %s364 = smul.addr %s363, 4
        %s365 = scalar_lea.vmem [#allocation8], %s364
        %p366 = pneg %p128
        %p367 = pneg %p125
        %s368 = sand.u32 %s141, 1
        %s369 = scalar_lea.sflag [#allocation10], %s368
        %s370 = sand.u32 %s141, 1
        %s371 = smul.addr %s370, 4
        %s372 = scalar_lea.vmem [#allocation9], %s371
        %p373 = pneg %p154
        %p374 = pneg %p151
        %p375 = pneg %p175
        %p376 = pneg %p172
        %p377 = pneg %p203
        %p378 = pneg %p200
        %s379 = sand.u32 %s190, 1
        %s380 = scalar_lea.sflag [#allocation5], %s379
        %s381 = sand.u32 %s190, 1
        %s382 = smul.addr %s381, 8
        %s383 = scalar_lea.vmem [#allocation11], %s382
        %p385 = scmp.eq.s32.totalorder %s35, 0
        // Predicated region
        $region57: #{tpu_custom_call.1} parent=39 // pred_check
          %p386 = pneg %p385
        $region58: #{tpu_custom_call.1} parent=39 // pred_check_branch
          %388 = sbr.rel (%p386) target = $region60
        $region59: #{tpu_custom_call.1} parent=39 // pred_region
          %vm389 = vcmask 261120
          %390 = vst.msk [vmem:[#allocation2] sm:$0xff] %vm389, 0.0
        $region60: #{tpu_custom_call.1} parent=39 // pred_fallthru
          _
        %v391 = vld [vmem:[%s315] sm:$0xf]
        %v392 = vld [vmem:[%s324] sm:$0xf]
        %v393 = vld [vmem:[%s333] sm:$0xf]
        %vm394 = vcmask 64512
        %v396 = vsel %vm394, %v391, 0
        %v399 = vsel %vm394, %v392, 0
        %401 = vmatprep.subr.bf16.mxu0 0
        %402 = vmatpush1.bf16.xpose.msra.mxu0 0
        %403 = vmatprep.subr.bf16.mxu0 0
        %404 = vmatpush1.bf16.xpose.msra.mxu0 0
        %405 = vmatprep.subr.bf16.mxu0 0
        %406 = vmatpush1.bf16.xpose.msra.mxu0 0
        %407 = vmatprep.subr.bf16.mxu0 0
        %408 = vmatpush1.bf16.xpose.msra.mxu0 0
        %409 = vmatprep.subr.bf16.mxu0 0
        %410 = vmatpush1.bf16.xpose.msra.mxu0 0
        %411 = vmatprep.subr.bf16.mxu0 0
        %412 = vmatpush1.bf16.xpose.msra.mxu0 0
        %413 = vmatprep.subr.bf16.mxu0 0
        %414 = vmatpush1.bf16.xpose.msra.mxu0 0
        %415 = vmatprep.subr.bf16.mxu0 0
        %416 = vmatpush1.bf16.xpose.msra.mxu0 %v399
        %417 = vmatprep.subr.bf16.mxu0 0
        %418 = vmatpush2.bf16.xpose.msra.mxu0 0
        %419 = vmatprep.subr.bf16.mxu0 0
        %420 = vmatpush2.bf16.xpose.msra.mxu0 0
        %421 = vmatprep.subr.bf16.mxu0 0
        %422 = vmatpush2.bf16.xpose.msra.mxu0 0
        %423 = vmatprep.subr.bf16.mxu0 0
        %424 = vmatpush2.bf16.xpose.msra.mxu0 0
        %425 = vmatprep.subr.bf16.mxu0 0
        %426 = vmatpush2.bf16.xpose.msra.mxu0 0
        %427 = vmatprep.subr.bf16.mxu0 0
        %428 = vmatpush2.bf16.xpose.msra.mxu0 0
        %429 = vmatprep.subr.bf16.mxu0 0
        %430 = vmatpush2.bf16.xpose.msra.mxu0 0
        %431 = vmatprep.subr.bf16.mxu0 0
        %432 = vmatpush2.bf16.xpose.msra.mxu0 0
        %433 = vmatprep.mubr.bf16.mxu0 0
        %434 = vmatmul.mubr.bf16.gmra.mxu0 %v396
        %v435 = vpop.f32.mrf.mxu0
        %v436 = vadd.f32 0.0, %v435
        %v437 = vpop.f32.mrf.mxu0
        %v438 = vpop.f32.mrf.mxu0
        %v439 = vpop.f32.mrf.mxu0
        %440 = vdwg.mxu0
        %v441 = vsel %vm394, %v436, -inf
        %442 = vmax.xlane.f32.xlu0 %v441
        %v443 = vpop.xlane.xlu0 %442
        %v444 = vsub.f32 %v436, %v443
        %v445 = vmul.f32 %v444, 1.442695
        %v446 = vpow.pop %v445
        %v447 = vsel %vm394, %v446, 0.0
        %448 = vadd.xlane.f32.xlu0 %v447
        %v449 = vpop.xlane.xlu0 %448
        %v450 = vpack.c.bf16 %v446, %v446
        %v452 = vsel %vm394, %v450, 0
        %vm454 = vcmask 1043456
        %v456 = vsel %vm454, %v393, 0
        %458 = vmatprep.subr.bf16.mxu0 0
        %459 = vmatpush1.bf16.msra.mxu0 0
        %460 = vmatprep.subr.bf16.mxu0 0
        %461 = vmatpush1.bf16.msra.mxu0 0
        %462 = vmatprep.subr.bf16.mxu0 0
        %463 = vmatpush1.bf16.msra.mxu0 0
        %464 = vmatprep.subr.bf16.mxu0 0
        %465 = vmatpush1.bf16.msra.mxu0 0
        %466 = vmatprep.subr.bf16.mxu0 0
        %467 = vmatpush1.bf16.msra.mxu0 0
        %468 = vmatprep.subr.bf16.mxu0 0
        %469 = vmatpush1.bf16.msra.mxu0 0
        %470 = vmatprep.subr.bf16.mxu0 0
        %471 = vmatpush1.bf16.msra.mxu0 0
        %472 = vmatprep.subr.bf16.mxu0 0
        %473 = vmatpush1.bf16.msra.mxu0 %v456
        %474 = vmatprep.subr.bf16.mxu0 0
        %475 = vmatpush2.bf16.msra.mxu0 0
        %476 = vmatprep.subr.bf16.mxu0 0
        %477 = vmatpush2.bf16.msra.mxu0 0
        %478 = vmatprep.subr.bf16.mxu0 0
        %479 = vmatpush2.bf16.msra.mxu0 0
        %480 = vmatprep.subr.bf16.mxu0 0
        %481 = vmatpush2.bf16.msra.mxu0 0
        %482 = vmatprep.subr.bf16.mxu0 0
        %483 = vmatpush2.bf16.msra.mxu0 0
        %484 = vmatprep.subr.bf16.mxu0 0
        %485 = vmatpush2.bf16.msra.mxu0 0
        %486 = vmatprep.subr.bf16.mxu0 0
        %487 = vmatpush2.bf16.msra.mxu0 0
        %488 = vmatprep.subr.bf16.mxu0 0
        %489 = vmatpush2.bf16.msra.mxu0 0
        %490 = vmatprep.mubr.bf16.mxu0 0
        %491 = vmatmul.mubr.bf16.gmra.mxu0 %v452
        %v492 = vpop.f32.mrf.mxu0
        %v493 = vadd.f32 0.0, %v492
        %v494 = vpop.f32.mrf.mxu0
        %v495 = vpop.f32.mrf.mxu0
        %v496 = vpop.f32.mrf.mxu0
        %497 = vdwg.mxu0
        %v498 = vrcp.pop %v449
        %v499 = vmul.f32 1.0, %v498
        %v500 = vmul.f32 %v493, %v499
        %v501 = vld [vmem:[#allocation2] sm:$0xff]
        %v502 = vpack.c.bf16 %v500, %v500
        %v503 = vld [vmem:[%s342] sm:$0xf]
        %v505 = vsel %vm394, %v502, 0
        %v508 = vsel %vm454, %v503, 0
        %510 = vmatprep.subr.bf16.mxu0 0
        %511 = vmatpush1.bf16.msra.mxu0 0
        %512 = vmatprep.subr.bf16.mxu0 0
        %513 = vmatpush1.bf16.msra.mxu0 0
        %514 = vmatprep.subr.bf16.mxu0 0
        %515 = vmatpush1.bf16.msra.mxu0 0
        %516 = vmatprep.subr.bf16.mxu0 0
        %517 = vmatpush1.bf16.msra.mxu0 0
        %518 = vmatprep.subr.bf16.mxu0 0
        %519 = vmatpush1.bf16.msra.mxu0 0
        %520 = vmatprep.subr.bf16.mxu0 0
        %521 = vmatpush1.bf16.msra.mxu0 0
        %522 = vmatprep.subr.bf16.mxu0 0
        %523 = vmatpush1.bf16.msra.mxu0 0
        %524 = vmatprep.subr.bf16.mxu0 0
        %525 = vmatpush1.bf16.msra.mxu0 %v508
        %526 = vmatprep.subr.bf16.mxu0 0
        %527 = vmatpush2.bf16.msra.mxu0 0
        %528 = vmatprep.subr.bf16.mxu0 0
        %529 = vmatpush2.bf16.msra.mxu0 0
        %530 = vmatprep.subr.bf16.mxu0 0
        %531 = vmatpush2.bf16.msra.mxu0 0
        %532 = vmatprep.subr.bf16.mxu0 0
        %533 = vmatpush2.bf16.msra.mxu0 0
        %534 = vmatprep.subr.bf16.mxu0 0
        %535 = vmatpush2.bf16.msra.mxu0 0
        %536 = vmatprep.subr.bf16.mxu0 0
        %537 = vmatpush2.bf16.msra.mxu0 0
        %538 = vmatprep.subr.bf16.mxu0 0
        %539 = vmatpush2.bf16.msra.mxu0 0
        %540 = vmatprep.subr.bf16.mxu0 0
        %541 = vmatpush2.bf16.msra.mxu0 0
        %542 = vmatprep.mubr.bf16.mxu0 0
        %543 = vmatmul.mubr.bf16.gmra.mxu0 %v505
        %v544 = vpop.f32.mrf.mxu0
        %v545 = vadd.f32 0.0, %v544
        %v546 = vpop.f32.mrf.mxu0
        %v547 = vpop.f32.mrf.mxu0
        %v548 = vpop.f32.mrf.mxu0
        %549 = vdwg.mxu0
        %v550 = vadd.f32 %v501, %v545
        %vm551 = vcmask 261120
        %552 = vst.msk [vmem:[#allocation2] sm:$0xff] %vm551, %v550
        %p553 = scmp.eq.s32.totalorder %s35, 3
        // Predicated region
        $region61: #{tpu_custom_call.1} parent=39 // pred_check
          %p554 = pneg %p553
        $region62: #{tpu_custom_call.1} parent=39 // pred_check_branch
          %556 = sbr.rel (%p554) target = $region64
        $region63: #{tpu_custom_call.1} parent=39 // pred_region
          %v557 = vld [vmem:[#allocation2] sm:$0xff]
          %v558 = vld [vmem:[%s4] sm:$0x1]
          %v560 = vlaneseq
          %v561 = vshrl.u32 %v560, 7
          %v562 = vsub.s32 0, %v561
          %v563 = vrot.slane %v558, %v562
          %v565 = vadd.f32 %v557, %v563
          %566 = vst.msk [vmem:[%s383] sm:$0xff] %vm551, %v565
        $region64: #{tpu_custom_call.1} parent=39 // pred_fallthru
          _
        %s567 = sand.u32 %s190, 1
        %s568 = scalar_lea.sflag [#allocation5], %s567
        %s569 = sand.u32 %s190, 1
        %s570 = smul.addr %s569, 8
        %s571 = scalar_lea.vmem [#allocation11], %s570
        // Predicated region
        $region65: #{tpu_custom_call.1} parent=39 // pred_check
          %p572 = pneg %p200
        $region66: #{tpu_custom_call.1} parent=39 // pred_check_branch
          %574 = sbr.rel (%p572) target = $region68
        $region67: #{tpu_custom_call.1} parent=39 // pred_region
          %s576 = ssub.s32 128, 128
          %577 = vsyncadd %s568, %s576
          %s578 = sadd.s32 %s34, %s33
          %s579 = smul.addr %s578, 128
          %s580 = scalar_lea.hbm %s5, %s579
          %s582 = sshll.u32 %s571, 4
          %s583 = int_to_ptr.vmem [resolvable:$true] %s582
          %585 = dma.vmem_to_hbm [thread:$0]  %s583, 128, %s580, %s568
        $region68: #{tpu_custom_call.1} parent=39 // pred_fallthru
          _
      $region40: #{tpu_custom_call.1} parent=5 // pred_fallthru
        _
      %p586 = scmp.le.s32.totalorder 2, %s23
      // Predicated region
      $region69: #{tpu_custom_call.1} parent=5 // pred_check
        %p587 = pneg %p586
      $region70: #{tpu_custom_call.1} parent=5 // pred_check_branch
        %589 = sbr.rel (%p587) target = $region72
      $region71: #{tpu_custom_call.1} parent=5 // pred_region
        %s590 = ssub.s32 %s23, 2
        // Predicated region
        $region73: #{tpu_custom_call.1} parent=71 // pred_check
          %p591 = pneg %p206
        $region74: #{tpu_custom_call.1} parent=71 // pred_check_branch
          %593 = sbr.rel (%p591) target = $region76
        $region75: #{tpu_custom_call.1} parent=71 // pred_region
          %s594 = sand.u32 %s191, 1
          %s595 = scalar_lea.sflag [#allocation5], %s594
          %s596 = sand.u32 %s191, 1
          %s597 = smul.addr %s596, 8
          %s598 = scalar_lea.vmem [#allocation11], %s597
          %599 = dma.done %s595, 128
        $region76: #{tpu_custom_call.1} parent=71 // pred_fallthru
          _
      $region72: #{tpu_custom_call.1} parent=5 // pred_fallthru
        _
    $region6: #{tpu_custom_call.1} parent=1 // loop_footer
      %s27 = sadd.s32 1, %s23
    $region7: #{tpu_custom_call.1} parent=1 // loop_footer_branch
      %22 = sbr.rel target = $region3
    $region8: #{tpu_custom_call.1} parent=1 // loop_exit
      _
    %600 = vsyncpa [#allocation4], 1
    %s601 = scalar_lea.sflag [#allocation4], 1
    %602 = vsyncpa %s601, 1
    %603 = vsyncpa [#allocation7], 1
    %s604 = scalar_lea.sflag [#allocation7], 1
    %605 = vsyncpa %s604, 1
    %606 = vsyncpa [#allocation10], 1
    %s607 = scalar_lea.sflag [#allocation10], 1
    %608 = vsyncpa %s607, 1
    %609 = vsyncpa [#allocation5], 1
    %s610 = scalar_lea.sflag [#allocation5], 1
    %611 = vsyncpa %s610, 1

</llo_original>
